<compile_context>
chip_gen: v5e
topology: v5e:2x2
jax: 0.10.0
libtpu: 0.0.40
codegen_flags: <defaults>
</compile_context>

<pallas_src>
import functools
import math

import numpy as np
import jax
import jax.numpy as jnp
from jax.experimental import pallas as pl
from jax.experimental.pallas import tpu as pltpu


# ---------------- host-side helpers (resample folded into matrices) ---------

def _sinc(x):
    return np.where(x != 0, np.sin(np.pi * x) / (np.pi * x), 1.0)


def _lanczos(x, a):
    cond = np.logical_and(-a < x, x < a)
    out = np.where(cond, _sinc(x) * _sinc(x / a), 0.0)
    return out / out.sum()


def _ramp(ratio, width):
    n = math.ceil(width / ratio + 1)
    out = np.arange(n, dtype=np.float64) * ratio
    full = np.concatenate([-out[1:][::-1], out])
    return full[1:-1]


def _reflect(q, h):
    # F.pad(..., 'reflect') index mapping (no edge repeat)
    while q < 0 or q >= h:
        if q < 0:
            q = -q
        if q >= h:
            q = 2 * (h - 1) - q
    return q


def _lanczos_conv_matrix(h, dh):
    """Matrix form of the reflect-pad + 1-D lanczos conv used in resample()."""
    if dh >= h:
        return np.eye(h, dtype=np.float64)
    k = _lanczos(_ramp(dh / h, 2), 2)
    pad = (len(k) - 1) // 2
    L = np.zeros((h, h), dtype=np.float64)
    for i in range(h):
        for j in range(len(k)):
            q = _reflect(i + j - pad, h)
            L[i, q] += k[j]
    return L


def _bicubic_matrix(out_size, in_size, A=-0.75):
    """torch F.interpolate(mode='bicubic', align_corners=True) as a matrix."""
    def c1(x):
        return ((A + 2) * x - (A + 3)) * x * x + 1

    def c2(x):
        return ((A * x - 5 * A) * x + 8 * A) * x - 4 * A

    B = np.zeros((out_size, in_size), dtype=np.float64)
    for p in range(out_size):
        x = 0.0 if out_size == 1 else p * (in_size - 1) / (out_size - 1)
        f = int(np.floor(x))
        t = x - f
        w = [c2(t + 1), c1(t), c1(1 - t), c2(2 - t)]
        for j, idx in enumerate([f - 1, f, f + 1, f + 2]):
            idx = min(max(idx, 0), in_size - 1)
            B[p, idx] += w[j]
    return B


@functools.lru_cache(maxsize=None)
def _resample_matrix(size, cut_size):
    # resample(crop, (cut_size, cut_size)) == M @ crop @ M.T  (per 2-D image)
    L = _lanczos_conv_matrix(size, cut_size)
    Bi = _bicubic_matrix(cut_size, size)
    return (Bi @ L).astype(np.float32)


# ---------------------------- Pallas kernel ---------------------------------

def _cutout_kernel(my_ref, mxt_ref, crops_ref, out_ref):
    """One cutout x one chunk of (N*C) single-channel images.

    my_ref:    (1, cut, S)       bf16  left resample matrix of this cutout
    mxt_ref:   (1, S, cut)       bf16  right resample matrix (pre-transposed)
    crops_ref: (1, B, S, S)      bf16  zero-padded crops, B = image chunk
    out_ref:   (1, B, cut, cut)  f32
    """
    my = my_ref[0]                       # (cut, S)
    mxt = mxt_ref[0]                     # (S, cut)
    crops = crops_ref[0]                 # (B, S, S)
    b, s, _ = crops.shape
    cut = my.shape[0]

    # Right multiply for the whole chunk as one tall MXU matmul.
    # The leading-dim collapse (B, S, S) -> (B*S, S) is layout-free because S
    # is padded to a multiple of 8 host-side.
    t = jnp.dot(crops.reshape(b * s, s), mxt,
                preferred_element_type=jnp.float32)           # (B*S, cut) f32
    t = t.reshape(b, s, cut).astype(jnp.bfloat16)             # (B, S, cut) bf16

    # Left multiply, batched over the image chunk (batched MXU matmuls).
    my_b = jnp.broadcast_to(my[None], (b, cut, s))            # hoisted, once/step
    o = jnp.einsum("bps,bsq->bpq", my_b, t,
                   preferred_element_type=jnp.float32)        # (B, cut, cut) f32

    # ClampWithGrad forward.
    # TODO(synk): only the forward is implemented; ClampWithGrad's custom
    # backward (gradient pass-through outside [0,1]) is not reproduced.
    out_ref[0] = jnp.clip(o, 0.0, 1.0)


# ------------------------------ wrapper --------------------------------------

def _pick_chunk(nc, s_pad, cut_size, budget_bytes):
    """Largest divisor of nc whose per-step VMEM footprint fits the budget."""
    per_img = (2 * s_pad * s_pad * 2           # crops bf16, double-buffered
               + 2 * cut_size * cut_size * 4   # out f32, double-buffered
               + s_pad * cut_size * 6          # f32 + bf16 intermediate t
               + cut_size * s_pad * 2)         # broadcast copy of the left matrix
    chunk = int(max(1, min(nc, budget_bytes // max(per_img, 1))))
    while nc % chunk:
        chunk -= 1
    return chunk


def make_cutouts_pallas(x, cut_size, cutn, cut_pow=1.0, seed=0, chunk=None,
                        check=False):
    """Forward of MakeCutouts. x: (N, C, H, W) f32 -> (cutn*N, C, cut, cut) f32."""
    del cut_pow  # unused by the reference forward (stored but never applied)
    x = jnp.asarray(x, jnp.float32)
    n, c, side_y, side_x = x.shape
    nc = n * c
    min_size_width = min(side_x, side_y)
    lower_bound = float(cut_size) / float(min_size_width)
    max_s = min_size_width
    s_pad = -(-max_s // 8) * 8            # sublane-align crop / contraction dims

    # --- per-cutout randomness: one host RNG, no per-cutout device syncs -----
    # TODO(synk): torch RNG stream is not reproduced bit-exact; sizes/offsets
    # are drawn from numpy (they define concrete shapes, so they must be host
    # values anyway).
    rng = np.random.default_rng(seed)
    zs = np.clip(rng.normal(0.8, 0.3, size=cutn), lower_bound, 1.0)
    sizes = [int(min_size_width * float(z)) for z in zs]
    offs_x = [int(rng.integers(0, side_x - s + 1)) for s in sizes]
    offs_y = [int(rng.integers(0, side_y - s + 1)) for s in sizes]

    # --- on-device crop gather (zero-padded), bf16 ---------------------------
    # TODO(synk): every cutout still contracts over the fully padded s_pad;
    # bucketing cutouts by size (or scalar-prefetched dynamic K slicing) would
    # cut the remaining wasted MXU/DMA work.
    crop_list = []
    for ii in range(cutn):
        s, ox, oy = sizes[ii], offs_x[ii], offs_y[ii]
        cut = x[:, :, oy:oy + s, ox:ox + s].reshape(nc, s, s)
        crop_list.append(jnp.pad(cut, ((0, 0), (0, s_pad - s), (0, s_pad - s))))
    crops = jnp.stack(crop_list, axis=0).astype(jnp.bfloat16)  # (cutn, nc, S, S)

    # --- folded resample matrices (host side, cached per (size, cut_size)) ---
    my = np.zeros((cutn, cut_size, s_pad), np.float32)
    mxt = np.zeros((cutn, s_pad, cut_size), np.float32)
    for ii in range(cutn):
        m = _resample_matrix(sizes[ii], cut_size)              # (cut, size)
        my[ii, :, :sizes[ii]] = m
        mxt[ii, :sizes[ii], :] = m.T
    my_j = jnp.asarray(my, dtype=jnp.bfloat16)
    mxt_j = jnp.asarray(mxt, dtype=jnp.bfloat16)

    # --- tiling: bound per-step VMEM by the generation's capacity ------------
    try:
        vmem_cap = int(pltpu.get_tpu_info().vmem_capacity_bytes)
    except Exception:
        vmem_cap = 64 << 20               # conservative (v7x per-TC VMEM)
    if chunk is None:
        chunk = _pick_chunk(nc, s_pad, cut_size, vmem_cap // 4)
    chunk = int(max(1, min(chunk, nc)))
    while nc % chunk:
        chunk -= 1

    # On v7x both grid axes are "parallel" so (cutn * nc/chunk) shards across
    # the two TensorCores; on v5e/v6e it is a plain sequential pipeline.
    grid = (cutn, nc // chunk)

    out = pl.pallas_call(
        _cutout_kernel,
        out_shape=jax.ShapeDtypeStruct((cutn, nc, cut_size, cut_size),
                                       jnp.float32),
        grid=grid,
        in_specs=[
            pl.BlockSpec((1, cut_size, s_pad), lambda i, j: (i, 0, 0)),
            pl.BlockSpec((1, s_pad, cut_size), lambda i, j: (i, 0, 0)),
            pl.BlockSpec((1, chunk, s_pad, s_pad), lambda i, j: (i, j, 0, 0)),
        ],
        out_specs=pl.BlockSpec((1, chunk, cut_size, cut_size),
                               lambda i, j: (i, j, 0, 0)),
        compiler_params=pltpu.CompilerParams(
            dimension_semantics=("parallel", "parallel"),
            vmem_limit_bytes=int(min(3 * vmem_cap // 4, 96 << 20)),
        ),
    )(my_j, mxt_j, crops)

    if check:  # tests only: recomputes the op and blocks on a host transfer
        ref = jnp.clip(
            jnp.einsum("kph,kbhw,kwq->kbpq",
                       my_j.astype(jnp.float32),
                       crops.astype(jnp.float32),
                       mxt_j.astype(jnp.float32)),
            0.0, 1.0)
        np.testing.assert_allclose(np.asarray(out), np.asarray(ref),
                                   rtol=0.0, atol=3e-2)

    # torch.cat(cutouts, dim=0): cutout-major ordering over the batch axis.
    return out.reshape(cutn, n, c, cut_size, cut_size).reshape(
        cutn * n, c, cut_size, cut_size)


# --------------------------------- demo --------------------------------------

if __name__ == "__main__":
    N, C, H, W = 2, 3, 16, 16
    cut_size, cutn = 8, 4

    x = jax.random.uniform(jax.random.PRNGKey(0), (N, C, H, W),
                           dtype=jnp.float32)

    out = make_cutouts_pallas(x, cut_size, cutn, check=True)
    out = jax.block_until_ready(out)

    assert out.shape == (cutn * N, C, cut_size, cut_size)
    assert out.dtype == jnp.float32
    assert bool(jnp.all(out >= 0.0)) and bool(jnp.all(out <= 1.0))
    print("KERNEL_OK")
</pallas_src>

<mosaic_0001>
module attributes {stable_mosaic.version = 11 : i64} {
  func.func @_cutout_kernel(%arg0: i32, %arg1: i32, %arg2: memref<1x8x16xbf16, #tpu.memory_space<vmem>>, %arg3: memref<1x16x8xbf16, #tpu.memory_space<vmem>>, %arg4: memref<1x6x16x16xbf16, #tpu.memory_space<vmem>>, %arg5: memref<1x6x8x8xf32, #tpu.memory_space<vmem>>) attributes {dimension_semantics = [#tpu.dimension_semantics<parallel>, #tpu.dimension_semantics<parallel>], iteration_bounds = array<i64: 4, 1>, scalar_prefetch = 0 : i64, scratch_operands = 0 : i64, tpu.core_type = #tpu.core_type<tc>, window_params = [{transform_indices = @transform_0, window_bounds = array<i64: 1, 8, 16>}, {transform_indices = @transform_1, window_bounds = array<i64: 1, 16, 8>}, {transform_indices = @transform_2, window_bounds = array<i64: 1, 6, 16, 16>}, {transform_indices = @transform_3, window_bounds = array<i64: 1, 6, 8, 8>}]} {
    %c0 = arith.constant 0 : index
    %c0_0 = arith.constant 0 : index
    %c0_1 = arith.constant 0 : index
    %0 = vector.load %arg2[%c0, %c0_0, %c0_1] : memref<1x8x16xbf16, #tpu.memory_space<vmem>>, vector<1x8x16xbf16>
    %1 = vector.shape_cast %0 : vector<1x8x16xbf16> to vector<8x16xbf16>
    %c0_2 = arith.constant 0 : index
    %c0_3 = arith.constant 0 : index
    %c0_4 = arith.constant 0 : index
    %2 = vector.load %arg3[%c0_2, %c0_3, %c0_4] : memref<1x16x8xbf16, #tpu.memory_space<vmem>>, vector<1x16x8xbf16>
    %3 = vector.shape_cast %2 : vector<1x16x8xbf16> to vector<16x8xbf16>
    %c0_5 = arith.constant 0 : index
    %c0_6 = arith.constant 0 : index
    %c0_7 = arith.constant 0 : index
    %c0_8 = arith.constant 0 : index
    %4 = vector.load %arg4[%c0_5, %c0_6, %c0_7, %c0_8] : memref<1x6x16x16xbf16, #tpu.memory_space<vmem>>, vector<1x6x16x16xbf16>
    %5 = vector.shape_cast %4 : vector<1x6x16x16xbf16> to vector<6x16x16xbf16>
    %6 = vector.shape_cast %5 : vector<6x16x16xbf16> to vector<96x16xbf16>
    %cst = arith.constant dense<0.000000e+00> : vector<96x8xf32>
    %7 = tpu.matmul %6, %3, %cst {dimension_numbers = #tpu.dot_dimension_numbers<[1], [0], [0], [1], [0, 0, 1, 1], [], []>} : vector<96x16xbf16>, vector<16x8xbf16>, vector<96x8xf32> -> vector<96x8xf32>
    %8 = vector.shape_cast %7 : vector<96x8xf32> to vector<6x16x8xf32>
    %9 = arith.truncf %8 : vector<6x16x8xf32> to vector<6x16x8xbf16>
    %10 = vector.shape_cast %1 : vector<8x16xbf16> to vector<1x8x16xbf16>
    %11 = vector.shape_cast %10 : vector<1x8x16xbf16> to vector<1x8x16xbf16>
    %12 = vector.broadcast %11 : vector<1x8x16xbf16> to vector<6x8x16xbf16>
    "tpu.trace_start"() <{level = 10 : i32, message = "bps,bsq->bpq"}> : () -> ()
    %cst_9 = arith.constant dense<0.000000e+00> : vector<6x8x8xf32>
    %13 = tpu.matmul %12, %9, %cst_9 {dimension_numbers = #tpu.dot_dimension_numbers<[2], [1], [1], [2], [0, 0, 0, 1, 1, 2], [0], [0]>} : vector<6x8x16xbf16>, vector<6x16x8xbf16>, vector<6x8x8xf32> -> vector<6x8x8xf32>
    %cst_10 = arith.constant 0.000000e+00 : f32
    %cst_11 = arith.constant 1.000000e+00 : f32
    "tpu.trace_stop"() : () -> ()
    %14 = vector.broadcast %cst_10 : f32 to vector<6x8x8xf32>
    %15 = arith.maximumf %14, %13 : vector<6x8x8xf32>
    %16 = vector.broadcast %cst_11 : f32 to vector<6x8x8xf32>
    %17 = arith.minimumf %16, %15 : vector<6x8x8xf32>
    %c0_12 = arith.constant 0 : index
    %c0_13 = arith.constant 0 : index
    %c0_14 = arith.constant 0 : index
    %c0_15 = arith.constant 0 : index
    %18 = vector.load %arg5[%c0_12, %c0_13, %c0_14, %c0_15] : memref<1x6x8x8xf32, #tpu.memory_space<vmem>>, vector<1x6x8x8xf32>
    %19 = vector.shape_cast %18 : vector<1x6x8x8xf32> to vector<6x8x8xf32>
    %20 = vector.shape_cast %17 : vector<6x8x8xf32> to vector<1x6x8x8xf32>
    tpu.vector_store %arg5[%c0_12, %c0_13, %c0_14, %c0_15], %20 {strides = array<i32>} : memref<1x6x8x8xf32, #tpu.memory_space<vmem>>, vector<1x6x8x8xf32>,
    return
  }
  func.func @transform_0(%arg0: i32, %arg1: i32) -> (i32, i32, i32) {
    %c0_i32 = arith.constant 0 : i32
    %c0_i32_0 = arith.constant 0 : i32
    %c0_i32_1 = arith.constant 0 : i32
    return %arg0, %c0_i32, %c0_i32_0 : i32, i32, i32
  }
  func.func @transform_1(%arg0: i32, %arg1: i32) -> (i32, i32, i32) {
    %c0_i32 = arith.constant 0 : i32
    %c0_i32_0 = arith.constant 0 : i32
    %c0_i32_1 = arith.constant 0 : i32
    return %arg0, %c0_i32, %c0_i32_0 : i32, i32, i32
  }
  func.func @transform_2(%arg0: i32, %arg1: i32) -> (i32, i32, i32, i32) {
    %c0_i32 = arith.constant 0 : i32
    %c0_i32_0 = arith.constant 0 : i32
    %c0_i32_1 = arith.constant 0 : i32
    return %arg0, %arg1, %c0_i32, %c0_i32_0 : i32, i32, i32, i32
  }
  func.func @transform_3(%arg0: i32, %arg1: i32) -> (i32, i32, i32, i32) {
    %c0_i32 = arith.constant 0 : i32
    %c0_i32_0 = arith.constant 0 : i32
    %c0_i32_1 = arith.constant 0 : i32
    return %arg0, %arg1, %c0_i32, %c0_i32_0 : i32, i32, i32, i32
  }
}

</mosaic_0001>

<llo_original>
// kernel: tpu_custom_call.1
$region0: #{tpu_custom_call.1}
  #allocation0 [shape = 'u32[]', space=smem, size = 0x4, offset = 0x4, fixed_abs, tag = 'smem constant byte address 0x4 - core index']
  #allocation1 [shape = 'u32[72,128]{1,0:T(1,128)}', space=vmem, size = 0x9000, scoped, tag = 'internal scratch']
  %s0 = inlined_call_operand.vmem [shape: bf16[4,8,16], index: 0, kind: input, shape index: {}]
  %s1 = inlined_call_operand.vmem [shape: bf16[4,16,8], index: 1, kind: input, shape index: {}]
  %s2 = inlined_call_operand.hbm [shape: bf16[4,6,16,16], index: 2, kind: input, shape index: {}]
  %s3 = inlined_call_operand.hbm [shape: f32[4,6,8,8], index: 3, kind: output, shape index: {}]
  %s4 = sld [smem:[#allocation0]]
  $region49: #{tpu_custom_call.1} parent=0
    _
  %s6 = ssub.s32 1, %s4
  %s7 = scalar_select 0, %s6, %s4
  $region1: #{tpu_custom_call.1} parent=0
    #allocation2 [shape = 'u8[49152]{0}', space=vmem, size = 0xc000, scoped, tag = 'input window, operand 2']
    #allocation3 [shape = 's32[2]{0}', space=sflag, size = 0x8, scoped, tag = 'scoped memory for tpu_custom_call.1']
    #allocation4 [shape = 's32[2]{0}', space=sflag, size = 0x8, scoped, tag = 'scoped memory for tpu_custom_call.1']
    #allocation5 [shape = 'u8[49152]{0}', space=vmem, size = 0xc000, scoped, tag = 'output window, operand 0']
    %8 = vsyncpa [#allocation3], 0
    %s9 = scalar_lea.sflag [#allocation3], 1
    %10 = vsyncpa %s9, 0
    %11 = vsyncpa [#allocation4], 0
    %s12 = scalar_lea.sflag [#allocation4], 1
    %13 = vsyncpa %s12, 0
    loop: start=0, step=1, limit=6
    $region2: #{tpu_custom_call.1} parent=1 // loop_pre_header
      _
    $region3: #{tpu_custom_call.1} parent=1 // loop_header
      %s15 = sphi 0, %s19
      %p16 = scmp.ge.s32.totalorder %s15, 6
      %s22 = sphi 0, %s34
      %s23 = sphi 0, %s30
      %s24 = sphi 0, %s22
      %s25 = sphi 0, %s23
      %s26 = sphi 0, %s24
      %s27 = sphi 0, %s25
      %s37 = sphi 0, %s39
      %s40 = sphi 0, %s37
      %s41 = sphi 0, %s40
      %s57 = sphi 0, %s41
      %s63 = sphi 0, %s65
      %s66 = sphi 0, %s63
      %s67 = sphi 0, %s66
      %s83 = sphi 0, %s67
      %s91 = sphi 0, %s93
      %s94 = sphi 0, %s91
      %s95 = sphi 0, %s94
      %s111 = sphi 0, %s95
      %s119 = sphi 0, %s121
      %s122 = sphi 0, %s119
      %s123 = sphi 0, %s122
      %s139 = sphi 0, %s123
    $region4: #{tpu_custom_call.1} parent=1 // loop_header_branch
      %18 = sbr.rel (%p16) target = $region8
    $region5: #{tpu_custom_call.1} parent=1 // loop_body
      %s20 = ssub.s32 %s15, 1
      %s21 = ssub.s32 %s15, 2
      %s28 = sadd.s32 1, %s23
      %p29 = scmp.ge.s32.totalorder %s28, 1
      %s30 = scalar_select %p29, 0, %s28
      %s31 = sadd.s32 1, %s22
      %s32 = scalar_select %p29, %s31, %s22
      %p33 = scmp.ge.s32.totalorder %s32, 4
      %s34 = scalar_select %p33, 0, %s32
      %s35 = ssub.s32 %s22, %s34
      %p36 = scmp.eq.s32.totalorder %s35, 0
      %s38 = sadd.s32 %s37, 1
      %s39 = scalar_select %p36, %s37, %s38
      %p42 = pneg %p36
      %p43 = scmp.eq.s32.totalorder %s15, 3
      %p44 = por %p42, %p43
      %p45 = scmp.ne.s32.totalorder %s37, %s40
      %p46 = scmp.eq.s32.totalorder %s15, 0
      %p47 = por %p45, %p46
      %p48 = scmp.ne.s32.totalorder %s37, %s40
      %p49 = scmp.eq.s32.totalorder %s20, 3
      %p50 = por %p48, %p49
      %p51 = scmp.ne.s32.totalorder %s40, %s41
      %p52 = scmp.eq.s32.totalorder %s20, 0
      %p53 = por %p51, %p52
      %p54 = scmp.ne.s32.totalorder %s40, %s41
      %p55 = scmp.eq.s32.totalorder %s21, 3
      %p56 = por %p54, %p55
      %p58 = scmp.ne.s32.totalorder %s41, %s57
      %p59 = scmp.eq.s32.totalorder %s21, 0
      %p60 = por %p58, %p59
      %s61 = ssub.s32 %s22, %s34
      %p62 = scmp.eq.s32.totalorder %s61, 0
      %s64 = sadd.s32 %s63, 1
      %s65 = scalar_select %p62, %s63, %s64
      %p68 = pneg %p62
      %p69 = scmp.eq.s32.totalorder %s15, 3
      %p70 = por %p68, %p69
      %p71 = scmp.ne.s32.totalorder %s63, %s66
      %p72 = scmp.eq.s32.totalorder %s15, 0
      %p73 = por %p71, %p72
      %p74 = scmp.ne.s32.totalorder %s63, %s66
      %p75 = scmp.eq.s32.totalorder %s20, 3
      %p76 = por %p74, %p75
      %p77 = scmp.ne.s32.totalorder %s66, %s67
      %p78 = scmp.eq.s32.totalorder %s20, 0
      %p79 = por %p77, %p78
      %p80 = scmp.ne.s32.totalorder %s66, %s67
      %p81 = scmp.eq.s32.totalorder %s21, 3
      %p82 = por %p80, %p81
      %p84 = scmp.ne.s32.totalorder %s67, %s83
      %p85 = scmp.eq.s32.totalorder %s21, 0
      %p86 = por %p84, %p85
      %s87 = ssub.s32 %s22, %s34
      %s88 = ssub.s32 %s23, %s30
      %s89 = sor.u32 %s87, %s88
      %p90 = scmp.eq.s32.totalorder %s89, 0
      %s92 = sadd.s32 %s91, 1
      %s93 = scalar_select %p90, %s91, %s92
      %p96 = pneg %p90
      %p97 = scmp.eq.s32.totalorder %s15, 3
      %p98 = por %p96, %p97
      %p99 = scmp.ne.s32.totalorder %s91, %s94
      %p100 = scmp.eq.s32.totalorder %s15, 0
      %p101 = por %p99, %p100
      %p102 = scmp.ne.s32.totalorder %s91, %s94
      %p103 = scmp.eq.s32.totalorder %s20, 3
      %p104 = por %p102, %p103
      %p105 = scmp.ne.s32.totalorder %s94, %s95
      %p106 = scmp.eq.s32.totalorder %s20, 0
      %p107 = por %p105, %p106
      %p108 = scmp.ne.s32.totalorder %s94, %s95
      %p109 = scmp.eq.s32.totalorder %s21, 3
      %p110 = por %p108, %p109
      %p112 = scmp.ne.s32.totalorder %s95, %s111
      %p113 = scmp.eq.s32.totalorder %s21, 0
      %p114 = por %p112, %p113
      %s115 = ssub.s32 %s22, %s34
      %s116 = ssub.s32 %s23, %s30
      %s117 = sor.u32 %s115, %s116
      %p118 = scmp.eq.s32.totalorder %s117, 0
      %s120 = sadd.s32 %s119, 1
      %s121 = scalar_select %p118, %s119, %s120
      %p124 = pneg %p118
      %p125 = scmp.eq.s32.totalorder %s15, 3
      %p126 = por %p124, %p125
      %p127 = scmp.ne.s32.totalorder %s119, %s122
      %p128 = scmp.eq.s32.totalorder %s15, 0
      %p129 = por %p127, %p128
      %p130 = scmp.ne.s32.totalorder %s119, %s122
      %p131 = scmp.eq.s32.totalorder %s20, 3
      %p132 = por %p130, %p131
      %p133 = scmp.ne.s32.totalorder %s122, %s123
      %p134 = scmp.eq.s32.totalorder %s20, 0
      %p135 = por %p133, %p134
      %p136 = scmp.ne.s32.totalorder %s122, %s123
      %p137 = scmp.eq.s32.totalorder %s21, 3
      %p138 = por %p136, %p137
      %p140 = scmp.ne.s32.totalorder %s123, %s139
      %p141 = scmp.eq.s32.totalorder %s21, 0
      %p142 = por %p140, %p141
      %p143 = scmp.le.s32.totalorder 1, %s15
      %p144 = scmp.lt.s32.totalorder %s15, 5
      %p145 = pnand %p143, %p144
      %p146 = pneg %p145
      // Predicated region
      $region9: #{tpu_custom_call.1} parent=5 // pred_check
        _
      $region10: #{tpu_custom_call.1} parent=5 // pred_check_branch
        %148 = sbr.rel (%p145) target = $region12
      $region11: #{tpu_custom_call.1} parent=5 // pred_region
        %s149 = ssub.s32 %s15, 1
      $region12: #{tpu_custom_call.1} parent=5 // pred_fallthru
        _
      %p150 = scmp.lt.s32.totalorder %s15, 4
      // Predicated region
      $region13: #{tpu_custom_call.1} parent=5 // pred_check
        %p151 = pneg %p150
      $region14: #{tpu_custom_call.1} parent=5 // pred_check_branch
        %153 = sbr.rel (%p151) target = $region16
      $region15: #{tpu_custom_call.1} parent=5 // pred_region
        // Predicated region
        $region17: #{tpu_custom_call.1} parent=15 // pred_check
          %p154 = pneg %p47
        $region18: #{tpu_custom_call.1} parent=15 // pred_check_branch
          %156 = sbr.rel (%p154) target = $region20
        $region19: #{tpu_custom_call.1} parent=15 // pred_region
          %p157 = scmp.lt.s32.totalorder %s22, 3
          %s158 = scalar_select %p157, %s22, 3
          %s159 = smul.addr %s158, 4
          %s160 = scalar_lea.vmem %s0, %s159
        $region20: #{tpu_custom_call.1} parent=15 // pred_fallthru
          _
        // Predicated region
        $region21: #{tpu_custom_call.1} parent=15 // pred_check
          %p161 = pneg %p73
        $region22: #{tpu_custom_call.1} parent=15 // pred_check_branch
          %163 = sbr.rel (%p161) target = $region24
        $region23: #{tpu_custom_call.1} parent=15 // pred_region
          %p164 = scmp.lt.s32.totalorder %s22, 3
          %s165 = scalar_select %p164, %s22, 3
          %s166 = smul.addr %s165, 2
          %s167 = smul.addr %s166, 4
          %s168 = scalar_lea.vmem %s1, %s167
        $region24: #{tpu_custom_call.1} parent=15 // pred_fallthru
          _
        // Predicated region
        $region25: #{tpu_custom_call.1} parent=15 // pred_check
          %p169 = pneg %p101
        $region26: #{tpu_custom_call.1} parent=15 // pred_check_branch
          %171 = sbr.rel (%p169) target = $region28
        $region27: #{tpu_custom_call.1} parent=15 // pred_region
          %s172 = sand.u32 %s91, 1
          %s173 = scalar_lea.sflag [#allocation3], %s172
          %s174 = sand.u32 %s91, 1
          %s175 = smul.addr %s174, 48
          %s176 = scalar_lea.vmem [#allocation2], %s175
          %s177 = smul.u32 6, %s23
          %179 = vsyncadd %s173, 0
          %s180 = smul.addr %s177, 2
          %s181 = smul.addr %s22, 12
          %s182 = sadd.s32 %s180, %s181
          %s183 = smul.addr %s182, 4
          %s184 = scalar_lea.hbm %s2, %s183
          %s185 = sshll.u32 %s184, 4
          %s186 = int_to_ptr.hbm [resolvable:$true] %s185
          %s187 = sshll.u32 %s176, 4
          %s188 = int_to_ptr.vmem [resolvable:$true] %s187
          %193 = dma.hbm_to_vmem [thread:$0]  %s186, 768, %s188, %s173, 64, 64, 4
        $region28: #{tpu_custom_call.1} parent=15 // pred_fallthru
          _
      $region16: #{tpu_custom_call.1} parent=5 // pred_fallthru
        _
      %p194 = scmp.le.s32.totalorder 1, %s15
      %p195 = scmp.lt.s32.totalorder %s15, 5
      %p196 = pnand %p194, %p195
      %p197 = pneg %p196
      // Predicated region
      $region29: #{tpu_custom_call.1} parent=5 // pred_check
        _
      $region30: #{tpu_custom_call.1} parent=5 // pred_check_branch
        %199 = sbr.rel (%p196) target = $region32
      $region31: #{tpu_custom_call.1} parent=5 // pred_region
        %s200 = ssub.s32 %s15, 1
        %s201 = sand.u32 %s94, 1
        %s202 = scalar_lea.sflag [#allocation3], %s201
        %s203 = sand.u32 %s94, 1
        %s204 = smul.addr %s203, 48
        %s205 = scalar_lea.vmem [#allocation2], %s204
        // Predicated region
        $region33: #{tpu_custom_call.1} parent=31 // pred_check
          %p206 = pneg %p107
        $region34: #{tpu_custom_call.1} parent=31 // pred_check_branch
          %208 = sbr.rel (%p206) target = $region36
        $region35: #{tpu_custom_call.1} parent=31 // pred_region
          %210 = dma.done %s202, 768
        $region36: #{tpu_custom_call.1} parent=31 // pred_fallthru
          _
        %p211 = scmp.lt.s32.totalorder %s24, 3
        %s212 = scalar_select %p211, %s24, 3
        %s213 = smul.addr %s212, 4
        %s214 = scalar_lea.vmem %s0, %s213
        %p215 = pneg %p53
        %p216 = pneg %p50
        %p217 = scmp.lt.s32.totalorder %s24, 3
        %s218 = scalar_select %p217, %s24, 3
        %s219 = smul.addr %s218, 2
        %s220 = smul.addr %s219, 4
        %s221 = scalar_lea.vmem %s1, %s220
        %p222 = pneg %p79
        %p223 = pneg %p76
        %s224 = sand.u32 %s94, 1
        %s225 = scalar_lea.sflag [#allocation3], %s224
        %s226 = sand.u32 %s94, 1
        %s227 = smul.addr %s226, 48
        %s228 = scalar_lea.vmem [#allocation2], %s227
        %p229 = pneg %p107
        %p230 = pneg %p104
        %p231 = pneg %p135
        %p232 = pneg %p132
        %s233 = sand.u32 %s122, 1
        %s234 = scalar_lea.sflag [#allocation4], %s233
        %s235 = sand.u32 %s122, 1
        %s236 = smul.addr %s235, 48
        %s237 = scalar_lea.vmem [#allocation5], %s236
        %p238 = scmp.lt.s32.totalorder %s24, 3
        %s239 = scalar_select %p238, %s24, 3
        %s240 = smul.addr %s239, 4
        %s241 = scalar_lea.vmem %s0, %s240
        %p242 = scmp.lt.s32.totalorder %s24, 3
        %s243 = scalar_select %p242, %s24, 3
        %s244 = smul.addr %s243, 2
        %s245 = smul.addr %s244, 4
        %s246 = scalar_lea.vmem %s1, %s245
        %s247 = smul.u32 6, %s25
        %s248 = smul.u32 6, %s25
        %v250 = vld [vmem:[%s241] sm:$0xf]
        %v251 = vld [vmem:[%s246] sm:$0xf]
        %v252 = vld [vmem:[%s246 + $0x4] sm:$0xf]
        %v253 = vld [vmem:[%s205] sm:$0xf]
        %v254 = vld [vmem:[%s205 + $0x4] sm:$0xf]
        %v255 = vld [vmem:[%s205 + $0x8] sm:$0xf]
        %v256 = vld [vmem:[%s205 + $0xc] sm:$0xf]
        %v257 = vld [vmem:[%s205 + $0x10] sm:$0xf]
        %v258 = vld [vmem:[%s205 + $0x14] sm:$0xf]
        %v259 = vld [vmem:[%s205 + $0x18] sm:$0xf]
        %v260 = vld [vmem:[%s205 + $0x1c] sm:$0xf]
        %v261 = vld [vmem:[%s205 + $0x20] sm:$0xf]
        %v262 = vld [vmem:[%s205 + $0x24] sm:$0xf]
        %v263 = vld [vmem:[%s205 + $0x28] sm:$0xf]
        %v264 = vld [vmem:[%s205 + $0x2c] sm:$0xf]
        %v277 = vunpack.c.l.b16 %v253
        %v278 = vunpack.c.l.b16 %v254
        %v279 = vunpack.c.l.b16 %v255
        %v280 = vunpack.c.l.b16 %v256
        %v281 = vunpack.c.l.b16 %v257
        %v282 = vunpack.c.l.b16 %v258
        %v283 = vunpack.c.l.b16 %v259
        %v284 = vunpack.c.l.b16 %v260
        %v285 = vunpack.c.l.b16 %v261
        %v286 = vunpack.c.l.b16 %v262
        %v287 = vunpack.c.l.b16 %v263
        %v288 = vunpack.c.l.b16 %v264
        %v289 = vpack.c.b16 %v278, %v277
        %v290 = vpack.c.b16 %v280, %v279
        %v291 = vpack.c.b16 %v282, %v281
        %v292 = vpack.c.b16 %v284, %v283
        %v293 = vpack.c.b16 %v286, %v285
        %v294 = vpack.c.b16 %v288, %v287
        %v297 = vunpack.c.l.b16 %v251
        %v298 = vunpack.c.l.b16 %v252
        %v299 = vpack.c.b16 %v298, %v297
        %vm301 = vcmask 130048
        %v303 = vsel %vm301, %v289, 0
        %v306 = vsel %vm301, %v290, 0
        %v309 = vsel %vm301, %v291, 0
        %v312 = vsel %vm301, %v292, 0
        %v315 = vsel %vm301, %v293, 0
        %v318 = vsel %vm301, %v294, 0
        %320 = vmatpush.bf16.msra.mxu0 0
        %321 = vmatpush.bf16.msra.mxu0 0
        %322 = vmatpush.bf16.msra.mxu0 0
        %323 = vmatpush.bf16.msra.mxu0 0
        %324 = vmatpush.bf16.msra.mxu0 0
        %325 = vmatpush.bf16.msra.mxu0 0
        %326 = vmatpush.bf16.msra.mxu0 0
        %327 = vmatpush.bf16.msra.mxu0 %v299
        %328 = vmatmul.bf16.gmra.mxu0 %v303
        %v329 = vpop.f32.mrf.mxu0
        %v330 = vadd.f32 0.0, %v329
        %v331 = vpop.f32.mrf.mxu0
        %v332 = vadd.f32 0.0, %v331
        %333 = vmatmul.bf16.gmra.mxu0 %v306
        %v334 = vpop.f32.mrf.mxu0
        %v335 = vadd.f32 0.0, %v334
        %v336 = vpop.f32.mrf.mxu0
        %v337 = vadd.f32 0.0, %v336
        %338 = vmatmul.bf16.gmra.mxu0 %v309
        %v339 = vpop.f32.mrf.mxu0
        %v340 = vadd.f32 0.0, %v339
        %v341 = vpop.f32.mrf.mxu0
        %v342 = vadd.f32 0.0, %v341
        %343 = vmatmul.bf16.gmra.mxu0 %v312
        %v344 = vpop.f32.mrf.mxu0
        %v345 = vadd.f32 0.0, %v344
        %v346 = vpop.f32.mrf.mxu0
        %v347 = vadd.f32 0.0, %v346
        %348 = vmatmul.bf16.gmra.mxu0 %v315
        %v349 = vpop.f32.mrf.mxu0
        %v350 = vadd.f32 0.0, %v349
        %v351 = vpop.f32.mrf.mxu0
        %v352 = vadd.f32 0.0, %v351
        %353 = vmatmul.bf16.gmra.mxu0 %v318
        %v354 = vpop.f32.mrf.mxu0
        %v355 = vadd.f32 0.0, %v354
        %v356 = vpop.f32.mrf.mxu0
        %v357 = vadd.f32 0.0, %v356
        %358 = vdwg.mxu0
        %v359 = vpack.c.bf16 %v330, %v330
        %v360 = vpack.c.bf16 %v332, %v332
        %v361 = vpack.c.bf16 %v335, %v335
        %v362 = vpack.c.bf16 %v337, %v337
        %v363 = vpack.c.bf16 %v340, %v340
        %v364 = vpack.c.bf16 %v342, %v342
        %v365 = vpack.c.bf16 %v345, %v345
        %v366 = vpack.c.bf16 %v347, %v347
        %v367 = vpack.c.bf16 %v350, %v350
        %v368 = vpack.c.bf16 %v352, %v352
        %v369 = vpack.c.bf16 %v355, %v355
        %v370 = vpack.c.bf16 %v357, %v357
        %v373 = vunpack.c.l.b16 %v359
        %v374 = vunpack.c.l.b16 %v360
        %v375 = vpack.c.b16 %v374, %v373
        %v378 = vsel %vm301, %v250, 0
        %380 = vmatpush.bf16.msra.mxu0 0
        %381 = vmatpush.bf16.msra.mxu0 0
        %382 = vmatpush.bf16.msra.mxu0 0
        %383 = vmatpush.bf16.msra.mxu0 0
        %384 = vmatpush.bf16.msra.mxu0 0
        %385 = vmatpush.bf16.msra.mxu0 0
        %386 = vmatpush.bf16.msra.mxu0 0
        %387 = vmatpush.bf16.msra.mxu0 %v375
        %388 = vmatmul.bf16.gmra.mxu0 %v378
        %v389 = vpop.f32.mrf.mxu0
        %v390 = vadd.f32 0.0, %v389
        %v391 = vpop.f32.mrf.mxu0
        %392 = vdwg.mxu0
        %v395 = vunpack.c.l.b16 %v361
        %v396 = vunpack.c.l.b16 %v362
        %v397 = vpack.c.b16 %v396, %v395
        %399 = vmatpush.bf16.msra.mxu0 0
        %400 = vmatpush.bf16.msra.mxu0 0
        %401 = vmatpush.bf16.msra.mxu0 0
        %402 = vmatpush.bf16.msra.mxu0 0
        %403 = vmatpush.bf16.msra.mxu0 0
        %404 = vmatpush.bf16.msra.mxu0 0
        %405 = vmatpush.bf16.msra.mxu0 0
        %406 = vmatpush.bf16.msra.mxu0 %v397
        %407 = vmatmul.bf16.gmra.mxu0 %v378
        %v408 = vpop.f32.mrf.mxu0
        %v409 = vadd.f32 0.0, %v408
        %v410 = vpop.f32.mrf.mxu0
        %411 = vdwg.mxu0
        %v414 = vunpack.c.l.b16 %v363
        %v415 = vunpack.c.l.b16 %v364
        %v416 = vpack.c.b16 %v415, %v414
        %418 = vmatpush.bf16.msra.mxu0 0
        %419 = vmatpush.bf16.msra.mxu0 0
        %420 = vmatpush.bf16.msra.mxu0 0
        %421 = vmatpush.bf16.msra.mxu0 0
        %422 = vmatpush.bf16.msra.mxu0 0
        %423 = vmatpush.bf16.msra.mxu0 0
        %424 = vmatpush.bf16.msra.mxu0 0
        %425 = vmatpush.bf16.msra.mxu0 %v416
        %426 = vmatmul.bf16.gmra.mxu0 %v378
        %v427 = vpop.f32.mrf.mxu0
        %v428 = vadd.f32 0.0, %v427
        %v429 = vpop.f32.mrf.mxu0
        %430 = vdwg.mxu0
        %v433 = vunpack.c.l.b16 %v365
        %v434 = vunpack.c.l.b16 %v366
        %v435 = vpack.c.b16 %v434, %v433
        %437 = vmatpush.bf16.msra.mxu0 0
        %438 = vmatpush.bf16.msra.mxu0 0
        %439 = vmatpush.bf16.msra.mxu0 0
        %440 = vmatpush.bf16.msra.mxu0 0
        %441 = vmatpush.bf16.msra.mxu0 0
        %442 = vmatpush.bf16.msra.mxu0 0
        %443 = vmatpush.bf16.msra.mxu0 0
        %444 = vmatpush.bf16.msra.mxu0 %v435
        %445 = vmatmul.bf16.gmra.mxu0 %v378
        %v446 = vpop.f32.mrf.mxu0
        %v447 = vadd.f32 0.0, %v446
        %v448 = vpop.f32.mrf.mxu0
        %449 = vdwg.mxu0
        %v452 = vunpack.c.l.b16 %v367
        %v453 = vunpack.c.l.b16 %v368
        %v454 = vpack.c.b16 %v453, %v452
        %456 = vmatpush.bf16.msra.mxu0 0
        %457 = vmatpush.bf16.msra.mxu0 0
        %458 = vmatpush.bf16.msra.mxu0 0
        %459 = vmatpush.bf16.msra.mxu0 0
        %460 = vmatpush.bf16.msra.mxu0 0
        %461 = vmatpush.bf16.msra.mxu0 0
        %462 = vmatpush.bf16.msra.mxu0 0
        %463 = vmatpush.bf16.msra.mxu0 %v454
        %464 = vmatmul.bf16.gmra.mxu0 %v378
        %v465 = vpop.f32.mrf.mxu0
        %v466 = vadd.f32 0.0, %v465
        %v467 = vpop.f32.mrf.mxu0
        %468 = vdwg.mxu0
        %v471 = vunpack.c.l.b16 %v369
        %v472 = vunpack.c.l.b16 %v370
        %v473 = vpack.c.b16 %v472, %v471
        %475 = vmatpush.bf16.msra.mxu0 0
        %476 = vmatpush.bf16.msra.mxu0 0
        %477 = vmatpush.bf16.msra.mxu0 0
        %478 = vmatpush.bf16.msra.mxu0 0
        %479 = vmatpush.bf16.msra.mxu0 0
        %480 = vmatpush.bf16.msra.mxu0 0
        %481 = vmatpush.bf16.msra.mxu0 0
        %482 = vmatpush.bf16.msra.mxu0 %v473
        %483 = vmatmul.bf16.gmra.mxu0 %v378
        %v484 = vpop.f32.mrf.mxu0
        %v485 = vadd.f32 0.0, %v484
        %v486 = vpop.f32.mrf.mxu0
        %487 = vdwg.mxu0
        %v488 = vmax.f32 %v390, 0.0
        %v489 = vmax.f32 %v409, 0.0
        %v490 = vmax.f32 %v428, 0.0
        %v491 = vmax.f32 %v447, 0.0
        %v492 = vmax.f32 %v466, 0.0
        %v493 = vmax.f32 %v485, 0.0
        %v494 = vmin.f32 %v488, 1.0
        %v495 = vmin.f32 %v489, 1.0
        %v496 = vmin.f32 %v490, 1.0
        %v497 = vmin.f32 %v491, 1.0
        %v498 = vmin.f32 %v492, 1.0
        %v499 = vmin.f32 %v493, 1.0
        %vm500 = vcmask 64512
        %501 = vst.msk [vmem:[%s237] sm:$0xff] %vm500, %v494
        %502 = vst.msk [vmem:[%s237 + $0x8] sm:$0xff] %vm500, %v495
        %503 = vst.msk [vmem:[%s237 + $0x10] sm:$0xff] %vm500, %v496
        %504 = vst.msk [vmem:[%s237 + $0x18] sm:$0xff] %vm500, %v497
        %505 = vst.msk [vmem:[%s237 + $0x20] sm:$0xff] %vm500, %v498
        %506 = vst.msk [vmem:[%s237 + $0x28] sm:$0xff] %vm500, %v499
        %s507 = sand.u32 %s122, 1
        %s508 = scalar_lea.sflag [#allocation4], %s507
        %s509 = sand.u32 %s122, 1
        %s510 = smul.addr %s509, 48
        %s511 = scalar_lea.vmem [#allocation5], %s510
        // Predicated region
        $region37: #{tpu_custom_call.1} parent=31 // pred_check
          %p512 = pneg %p132
        $region38: #{tpu_custom_call.1} parent=31 // pred_check_branch
          %514 = sbr.rel (%p512) target = $region40
        $region39: #{tpu_custom_call.1} parent=31 // pred_region
          %s515 = smul.u32 6, %s25
          %517 = vsyncadd %s508, 0
          %s518 = smul.addr %s24, 6
          %s519 = sadd.s32 %s515, %s518
          %s520 = smul.addr %s519, 8
          %s521 = scalar_lea.hbm %s3, %s520
          %s522 = sshll.u32 %s511, 4
          %s523 = int_to_ptr.vmem [resolvable:$true] %s522
          %s524 = sshll.u32 %s521, 4
          %s525 = int_to_ptr.hbm [resolvable:$true] %s524
          %530 = dma.vmem_to_hbm [thread:$0]  %s523, 768, %s525, %s508, 128, 128, 8
        $region40: #{tpu_custom_call.1} parent=31 // pred_fallthru
          _
      $region32: #{tpu_custom_call.1} parent=5 // pred_fallthru
        _
      %p531 = scmp.le.s32.totalorder 2, %s15
      // Predicated region
      $region41: #{tpu_custom_call.1} parent=5 // pred_check
        %p532 = pneg %p531
      $region42: #{tpu_custom_call.1} parent=5 // pred_check_branch
        %534 = sbr.rel (%p532) target = $region44
      $region43: #{tpu_custom_call.1} parent=5 // pred_region
        %s535 = ssub.s32 %s15, 2
        // Predicated region
        $region45: #{tpu_custom_call.1} parent=43 // pred_check
          %p536 = pneg %p138
        $region46: #{tpu_custom_call.1} parent=43 // pred_check_branch
          %538 = sbr.rel (%p536) target = $region48
        $region47: #{tpu_custom_call.1} parent=43 // pred_region
          %s539 = sand.u32 %s123, 1
          %s540 = scalar_lea.sflag [#allocation4], %s539
          %s541 = sand.u32 %s123, 1
          %s542 = smul.addr %s541, 48
          %s543 = scalar_lea.vmem [#allocation5], %s542
          %545 = dma.done %s540, 768
        $region48: #{tpu_custom_call.1} parent=43 // pred_fallthru
          _
      $region44: #{tpu_custom_call.1} parent=5 // pred_fallthru
        _
    $region6: #{tpu_custom_call.1} parent=1 // loop_footer
      %s19 = sadd.s32 1, %s15
    $region7: #{tpu_custom_call.1} parent=1 // loop_footer_branch
      %14 = sbr.rel target = $region3
    $region8: #{tpu_custom_call.1} parent=1 // loop_exit
      _
    %546 = vsyncpa [#allocation3], 1
    %s547 = scalar_lea.sflag [#allocation3], 1
    %548 = vsyncpa %s547, 1
    %549 = vsyncpa [#allocation4], 1
    %s550 = scalar_lea.sflag [#allocation4], 1
    %551 = vsyncpa %s550, 1

</llo_original>
